<compile_context>
chip_gen: v6e
topology: v6e:2x2x1
jax: 0.10.0
libtpu: 0.0.40
codegen_flags: <defaults>
</compile_context>

<pallas_src>
import functools

import jax
import jax.numpy as jnp
from jax.experimental import pallas as pl
from jax.experimental.pallas import tpu as pltpu


LANE_W = 512          # lane-dense last dim (multiple of 128)
MAX_BLOCK_ROWS = 512  # rows per grid step (multiple of 8)


def _round_up(a, b):
    return (a + b - 1) // b * b


def _stable_bce_with_logits(x, t):
    # Numerically stable BCE-with-logits (same formula used by the reference
    # check below; differences vs. log1p are << the comparison tolerance).
    return jnp.maximum(x, 0.0) - x * t + jnp.log(1.0 + jnp.exp(-jnp.abs(x)))


def _focal_loss_kernel(x_ref, t_ref, o_ref, acc_ref, *,
                       alpha, gamma, n_valid, n_padded, scale):
    i = pl.program_id(0)

    @pl.when(i == 0)
    def _():
        acc_ref[...] = jnp.zeros_like(acc_ref)

    x = x_ref[...]
    t = t_ref[...]

    bce = _stable_bce_with_logits(x, t)
    pt = jnp.exp(-bce)
    omp = 1.0 - pt
    if gamma == 2.0:
        mod = omp * omp
    elif gamma == 1.0:
        mod = omp
    elif gamma == 0.0:
        mod = jnp.ones_like(omp)
    else:
        mod = jnp.power(jnp.maximum(omp, 1e-30), gamma)
    fl = alpha * mod * bce

    if n_valid != n_padded:
        # Mask out the zero-padded tail via the global linear element index.
        rows, cols = fl.shape
        row_ids = jax.lax.broadcasted_iota(jnp.int32, (rows, cols), 0)
        col_ids = jax.lax.broadcasted_iota(jnp.int32, (rows, cols), 1)
        lin = (i * rows + row_ids) * cols + col_ids
        fl = jnp.where(lin < n_valid, fl, 0.0)

    acc_ref[...] += fl

    @pl.when(i == pl.num_programs(0) - 1)
    def _():
        col = jnp.sum(acc_ref[...], axis=1, keepdims=True)        # (rows, 1)
        o_ref[...] = jnp.sum(col, axis=0, keepdims=True) * scale  # (1, 1)


def binary_focal_loss(inputs, targets, *, alpha=1.0, gamma=2.0,
                      size_average=True):
    """Pallas equivalent of BinaryFocalLoss.forward.

    Inputs are treated as logits (the reference module always applies
    BCEWithLogitsLoss regardless of its `logits` flag).
    """
    assert inputs.shape == targets.shape
    total = int(inputs.size)

    x = inputs.reshape(-1).astype(jnp.float32)
    t = targets.reshape(-1).astype(jnp.float32)

    rows_needed = pl.cdiv(total, LANE_W)
    block_rows = min(MAX_BLOCK_ROWS, _round_up(rows_needed, 8))
    rows_padded = _round_up(rows_needed, block_rows)
    n_padded = rows_padded * LANE_W
    pad = n_padded - total
    if pad:
        x = jnp.pad(x, (0, pad))
        t = jnp.pad(t, (0, pad))
    x = x.reshape(rows_padded, LANE_W)
    t = t.reshape(rows_padded, LANE_W)

    grid = (rows_padded // block_rows,)
    scale = (1.0 / total) if size_average else 1.0

    kernel = functools.partial(
        _focal_loss_kernel,
        alpha=float(alpha), gamma=float(gamma),
        n_valid=total, n_padded=n_padded, scale=float(scale))

    out = pl.pallas_call(
        kernel,
        out_shape=jax.ShapeDtypeStruct((1, 1), jnp.float32),
        grid=grid,
        in_specs=[
            pl.BlockSpec((block_rows, LANE_W), lambda i: (i, 0)),
            pl.BlockSpec((block_rows, LANE_W), lambda i: (i, 0)),
        ],
        out_specs=pl.BlockSpec((1, 1), lambda i: (0, 0)),
        scratch_shapes=[pltpu.VMEM((block_rows, LANE_W), jnp.float32)],
        compiler_params=pltpu.CompilerParams(
            dimension_semantics=("arbitrary",)),
    )(x, t)
    return out[0, 0]


# ---------------------------------------------------------------------------
# Pure-JAX reference (mirrors the PyTorch module)
# ---------------------------------------------------------------------------

def _ref_focal_loss(inputs, targets, alpha=1.0, gamma=2.0, size_average=True):
    x = inputs.astype(jnp.float32)
    t = targets.astype(jnp.float32)
    bce = _stable_bce_with_logits(x, t)
    pt = jnp.exp(-bce)
    fl = alpha * (1.0 - pt) ** gamma * bce
    return fl.mean() if size_average else fl.sum()


# ---------------------------------------------------------------------------
# Main
# ---------------------------------------------------------------------------

if __name__ == "__main__":
    # TODO(synk): the try/except + logger error handling of the PyTorch module
    # is host-side control flow and is not representable inside a TPU kernel.
    key = jax.random.PRNGKey(0)
    k1, k2 = jax.random.split(key)
    shape = (2, 4, 16, 16)  # batch=2, channels=4, spatial=16
    logits = jax.random.normal(k1, shape, jnp.float32) * 2.0
    targets = jax.random.bernoulli(k2, 0.3, shape).astype(jnp.float32)

    loss_mean_fn = jax.jit(
        lambda a, b: binary_focal_loss(a, b, alpha=1.0, gamma=2.0,
                                       size_average=True))
    loss_sum_fn = jax.jit(
        lambda a, b: binary_focal_loss(a, b, alpha=1.0, gamma=2.0,
                                       size_average=False))

    loss_mean = loss_mean_fn(logits, targets)
    loss_sum = loss_sum_fn(logits, targets)
    loss_mean, loss_sum = jax.block_until_ready((loss_mean, loss_sum))

    ref_mean = _ref_focal_loss(logits, targets, 1.0, 2.0, True)
    ref_sum = _ref_focal_loss(logits, targets, 1.0, 2.0, False)

    assert bool(jnp.isfinite(loss_mean)) and bool(jnp.isfinite(loss_sum))
    assert bool(jnp.allclose(loss_mean, ref_mean, rtol=1e-5, atol=1e-6)), \
        (float(loss_mean), float(ref_mean))
    assert bool(jnp.allclose(loss_sum, ref_sum, rtol=1e-5, atol=1e-4)), \
        (float(loss_sum), float(ref_sum))

    print("KERNEL_OK")
</pallas_src>

<mosaic_0001>
module attributes {stable_mosaic.version = 11 : i64} {
  func.func @_focal_loss_kernel(%arg0: i32, %arg1: memref<8x512xf32, #tpu.memory_space<vmem>>, %arg2: memref<8x512xf32, #tpu.memory_space<vmem>>, %arg3: memref<1x1xf32, #tpu.memory_space<vmem>>, %arg4: memref<8x512xf32, #tpu.memory_space<vmem>>) attributes {dimension_semantics = [#tpu.dimension_semantics<arbitrary>], iteration_bounds = array<i64: 1>, scalar_prefetch = 0 : i64, scratch_operands = 1 : i64, tpu.core_type = #tpu.core_type<tc>, window_params = [{transform_indices = @transform_0, window_bounds = array<i64: 8, 512>}, {transform_indices = @transform_1, window_bounds = array<i64: 8, 512>}, {pipeline_mode = #tpu.pipeline_mode<synchronous>, transform_indices = @transform_2, window_bounds = array<i64: 1, 1>}]} {
    %c0_i32 = arith.constant 0 : i32
    %0 = arith.cmpi eq, %arg0, %c0_i32 : i32
    %1 = arith.extui %0 : i1 to i32
    %c0_i32_0 = arith.constant 0 : i32
    %2 = arith.cmpi ne, %1, %c0_i32_0 : i32
    scf.if %2 {
      %cst_16 = arith.constant 0.000000e+00 : f32
      %44 = vector.broadcast %cst_16 : f32 to vector<8x512xf32>
      %c0_17 = arith.constant 0 : index
      %c0_18 = arith.constant 0 : index
      %45 = vector.load %arg4[%c0_17, %c0_18] : memref<8x512xf32, #tpu.memory_space<vmem>>, vector<8x512xf32>
      tpu.vector_store %arg4[%c0_17, %c0_18], %44 {strides = array<i32>} : memref<8x512xf32, #tpu.memory_space<vmem>>, vector<8x512xf32>,
    } else {
    }
    %c0 = arith.constant 0 : index
    %c0_1 = arith.constant 0 : index
    %3 = vector.load %arg1[%c0, %c0_1] : memref<8x512xf32, #tpu.memory_space<vmem>>, vector<8x512xf32>
    %c0_2 = arith.constant 0 : index
    %c0_3 = arith.constant 0 : index
    %4 = vector.load %arg2[%c0_2, %c0_3] : memref<8x512xf32, #tpu.memory_space<vmem>>, vector<8x512xf32>
    %cst = arith.constant 0.000000e+00 : f32
    %5 = vector.broadcast %cst : f32 to vector<8x512xf32>
    %6 = arith.maximumf %3, %5 : vector<8x512xf32>
    %7 = arith.mulf %3, %4 : vector<8x512xf32>
    %8 = arith.subf %6, %7 : vector<8x512xf32>
    %9 = math.absf %3 : vector<8x512xf32>
    %cst_4 = arith.constant 0.000000e+00 : f32
    %10 = vector.broadcast %cst_4 : f32 to vector<8x512xf32>
    %11 = arith.subf %10, %9 : vector<8x512xf32>
    %12 = math.exp %11 : vector<8x512xf32>
    %cst_5 = arith.constant 1.000000e+00 : f32
    %13 = vector.broadcast %cst_5 : f32 to vector<8x512xf32>
    %14 = arith.addf %13, %12 : vector<8x512xf32>
    %15 = math.log %14 : vector<8x512xf32>
    %16 = arith.addf %8, %15 : vector<8x512xf32>
    %cst_6 = arith.constant 0.000000e+00 : f32
    %17 = vector.broadcast %cst_6 : f32 to vector<8x512xf32>
    %18 = arith.subf %17, %16 : vector<8x512xf32>
    %19 = math.exp %18 : vector<8x512xf32>
    %cst_7 = arith.constant 1.000000e+00 : f32
    %20 = vector.broadcast %cst_7 : f32 to vector<8x512xf32>
    %21 = arith.subf %20, %19 : vector<8x512xf32>
    %22 = arith.mulf %21, %21 : vector<8x512xf32>
    %cst_8 = arith.constant 1.000000e+00 : f32
    %23 = vector.broadcast %cst_8 : f32 to vector<8x512xf32>
    %24 = arith.mulf %23, %22 : vector<8x512xf32>
    %25 = arith.mulf %24, %16 : vector<8x512xf32>
    %26 = tpu.iota {dimensions = array<i32: 0>} : vector<8x512xi32>
    %27 = tpu.iota {dimensions = array<i32: 1>} : vector<8x512xi32>
    %c8_i32 = arith.constant 8 : i32
    %28 = arith.muli %arg0, %c8_i32 : i32
    %29 = vector.broadcast %28 : i32 to vector<8x512xi32>
    %30 = arith.addi %29, %26 : vector<8x512xi32>
    %c512_i32 = arith.constant 512 : i32
    %31 = vector.broadcast %c512_i32 : i32 to vector<8x512xi32>
    %32 = arith.muli %30, %31 : vector<8x512xi32>
    %33 = arith.addi %32, %27 : vector<8x512xi32>
    %c2048_i32 = arith.constant 2048 : i32
    %34 = vector.broadcast %c2048_i32 : i32 to vector<8x512xi32>
    %35 = arith.cmpi slt, %33, %34 : vector<8x512xi32>
    %cst_9 = arith.constant 0.000000e+00 : f32
    %36 = vector.broadcast %cst_9 : f32 to vector<8x512xf32>
    %37 = arith.select %35, %25, %36 : vector<8x512xi1>, vector<8x512xf32>
    %c0_10 = arith.constant 0 : index
    %c0_11 = arith.constant 0 : index
    %38 = vector.load %arg4[%c0_10, %c0_11] : memref<8x512xf32, #tpu.memory_space<vmem>>, vector<8x512xf32>
    %39 = arith.addf %38, %37 : vector<8x512xf32>
    %c0_12 = arith.constant 0 : index
    %c0_13 = arith.constant 0 : index
    %40 = vector.load %arg4[%c0_12, %c0_13] : memref<8x512xf32, #tpu.memory_space<vmem>>, vector<8x512xf32>
    tpu.vector_store %arg4[%c0_12, %c0_13], %39 {strides = array<i32>} : memref<8x512xf32, #tpu.memory_space<vmem>>, vector<8x512xf32>,
    %c0_i32_14 = arith.constant 0 : i32
    %41 = arith.cmpi eq, %arg0, %c0_i32_14 : i32
    %42 = arith.extui %41 : i1 to i32
    %c0_i32_15 = arith.constant 0 : i32
    %43 = arith.cmpi ne, %42, %c0_i32_15 : i32
    scf.if %43 {
      %c0_16 = arith.constant 0 : index
      %c0_17 = arith.constant 0 : index
      %44 = vector.load %arg4[%c0_16, %c0_17] : memref<8x512xf32, #tpu.memory_space<vmem>>, vector<8x512xf32>
      %cst_18 = arith.constant dense<0.000000e+00> : vector<8xf32>
      %45 = vector.multi_reduction <add>, %44, %cst_18 [1] : vector<8x512xf32> to vector<8xf32>
      %46 = vector.shape_cast %45 : vector<8xf32> to vector<8x1xf32>
      %cst_19 = arith.constant dense<0.000000e+00> : vector<1xf32>
      %47 = vector.multi_reduction <add>, %46, %cst_19 [0] : vector<8x1xf32> to vector<1xf32>
      %48 = vector.shape_cast %47 : vector<1xf32> to vector<1x1xf32>
      %cst_20 = arith.constant 4.8828125E-4 : f32
      %49 = vector.broadcast %cst_20 : f32 to vector<1x1xf32>
      %50 = arith.mulf %48, %49 : vector<1x1xf32>
      %c0_21 = arith.constant 0 : index
      %c0_22 = arith.constant 0 : index
      %51 = vector.load %arg3[%c0_21, %c0_22] : memref<1x1xf32, #tpu.memory_space<vmem>>, vector<1x1xf32>
      tpu.vector_store %arg3[%c0_21, %c0_22], %50 {strides = array<i32>} : memref<1x1xf32, #tpu.memory_space<vmem>>, vector<1x1xf32>,
    } else {
    }
    return
  }
  func.func @transform_0(%arg0: i32) -> (i32, i32) {
    %c0_i32 = arith.constant 0 : i32
    %c0_i32_0 = arith.constant 0 : i32
    return %arg0, %c0_i32 : i32, i32
  }
  func.func @transform_1(%arg0: i32) -> (i32, i32) {
    %c0_i32 = arith.constant 0 : i32
    %c0_i32_0 = arith.constant 0 : i32
    return %arg0, %c0_i32 : i32, i32
  }
  func.func @transform_2(%arg0: i32) -> (i32, i32) {
    %c0_i32 = arith.constant 0 : i32
    %c0_i32_0 = arith.constant 0 : i32
    %c0_i32_1 = arith.constant 0 : i32
    return %c0_i32, %c0_i32_0 : i32, i32
  }
}

</mosaic_0001>

<llo_original>
// kernel: _lambda_.1
$region0: #{_lambda_.1}
  #allocation0 [shape = 'u32[]', space=smem, size = 0x4, offset = 0x4, fixed_abs, tag = 'smem constant byte address 0x4 - core index']
  #allocation1 [shape = 'u32[144,128]{1,0:T(1,128)}', space=vmem, size = 0x12000, scoped, tag = 'internal scratch']
  #allocation2 [shape = 'f32[8,512]{1,0:T(8,128)}', space=vmem, size = 0x4000, scoped, tag = 'scratch operand']
  %s0 = inlined_call_operand.vmem [shape: f32[8,512], index: 0, kind: input, shape index: {}]
  %s1 = inlined_call_operand.vmem [shape: f32[8,512], index: 1, kind: input, shape index: {}]
  %s2 = inlined_call_operand.hbm [shape: f32[1,1], index: 2, kind: output, shape index: {}]
  %s3 = sld [smem:[#allocation0]]
  $region26: #{_lambda_.1} parent=0
    _
  %s5 = ssub.s32 1, %s3
  %s6 = scalar_select 0, %s5, %s3
  $region1: #{_lambda_.1} parent=0
    #allocation3 [shape = 'u8[512]{0}', space=vmem, size = 0x400, scoped, tag = 'output window, operand 0, single buffered']
    #allocation4 [shape = 's32[1]{0}', space=sflag, size = 0x4, scoped, tag = 'scoped memory for _lambda_.1']
    %7 = vsyncpa [#allocation4], 0
    // Predicated region
    $region2: #{_lambda_.1} parent=1 // pred_check
      _
    $region3: #{_lambda_.1} parent=1 // pred_check_branch
      %9 = sbr.rel (0) target = $region5
    $region4: #{_lambda_.1} parent=1 // pred_region
      _
    $region5: #{_lambda_.1} parent=1 // pred_fallthru
      _
    // Predicated region
    $region6: #{_lambda_.1} parent=1 // pred_check
      _
    $region7: #{_lambda_.1} parent=1 // pred_check_branch
      %11 = sbr.rel (0) target = $region9
    $region8: #{_lambda_.1} parent=1 // pred_region
      _
    $region9: #{_lambda_.1} parent=1 // pred_fallthru
      _
    %p12 = scmp.eq.s32.totalorder 0, 0
    // Predicated region
    $region10: #{_lambda_.1} parent=1 // pred_check
      %p13 = pneg %p12
    $region11: #{_lambda_.1} parent=1 // pred_check_branch
      %15 = sbr.rel (%p13) target = $region13
    $region12: #{_lambda_.1} parent=1 // pred_region
      %16 = vst [vmem:[#allocation2] sm:$0xff] 0.0
      %17 = vst [vmem:[#allocation2 + $0x8] sm:$0xff] 0.0
      %18 = vst [vmem:[#allocation2 + $0x10] sm:$0xff] 0.0
      %19 = vst [vmem:[#allocation2 + $0x18] sm:$0xff] 0.0
    $region13: #{_lambda_.1} parent=1 // pred_fallthru
      _
    %v20 = vld [vmem:[%s0] sm:$0xff]
    %v21 = vld [vmem:[%s0 + $0x8] sm:$0xff]
    %v22 = vld [vmem:[%s0 + $0x10] sm:$0xff]
    %v23 = vld [vmem:[%s0 + $0x18] sm:$0xff]
    %v24 = vld [vmem:[%s1] sm:$0xff]
    %v25 = vld [vmem:[%s1 + $0x8] sm:$0xff]
    %v26 = vld [vmem:[%s1 + $0x10] sm:$0xff]
    %v27 = vld [vmem:[%s1 + $0x18] sm:$0xff]
    %v28 = vmax.f32 %v20, 0.0
    %v29 = vmax.f32 %v21, 0.0
    %v30 = vmax.f32 %v22, 0.0
    %v31 = vmax.f32 %v23, 0.0
    %v32 = vmul.f32 %v20, %v24
    %v33 = vmul.f32 %v21, %v25
    %v34 = vmul.f32 %v22, %v26
    %v35 = vmul.f32 %v23, %v27
    %v36 = vsub.f32 %v28, %v32
    %v37 = vsub.f32 %v29, %v33
    %v38 = vsub.f32 %v30, %v34
    %v39 = vsub.f32 %v31, %v35
    %v40 = vand.u32 2147483647, %v20
    %v41 = vand.u32 2147483647, %v21
    %v42 = vand.u32 2147483647, %v22
    %v43 = vand.u32 2147483647, %v23
    %v44 = vsub.f32 0.0, %v40
    %v45 = vsub.f32 0.0, %v41
    %v46 = vsub.f32 0.0, %v42
    %v47 = vsub.f32 0.0, %v43
    %v48 = vmul.f32 %v44, 1.442695
    %v49 = vpow.pop %v48
    %v50 = vmul.f32 %v45, 1.442695
    %v51 = vpow.pop %v50
    %v52 = vmul.f32 %v46, 1.442695
    %v53 = vpow.pop %v52
    %v54 = vmul.f32 %v47, 1.442695
    %v55 = vpow.pop %v54
    %v56 = vadd.f32 %v49, 1.0
    %v57 = vadd.f32 %v51, 1.0
    %v58 = vadd.f32 %v53, 1.0
    %v59 = vadd.f32 %v55, 1.0
    %v60 = vlog2.pop %v56
    %v61 = vmul.f32 %v60, 0.6931472
    %v62 = vlog2.pop %v57
    %v63 = vmul.f32 %v62, 0.6931472
    %v64 = vlog2.pop %v58
    %v65 = vmul.f32 %v64, 0.6931472
    %v66 = vlog2.pop %v59
    %v67 = vmul.f32 %v66, 0.6931472
    %v68 = vadd.f32 %v36, %v61
    %v69 = vadd.f32 %v37, %v63
    %v70 = vadd.f32 %v38, %v65
    %v71 = vadd.f32 %v39, %v67
    %v72 = vsub.f32 0.0, %v68
    %v73 = vsub.f32 0.0, %v69
    %v74 = vsub.f32 0.0, %v70
    %v75 = vsub.f32 0.0, %v71
    %v76 = vmul.f32 %v72, 1.442695
    %v77 = vpow.pop %v76
    %v78 = vmul.f32 %v73, 1.442695
    %v79 = vpow.pop %v78
    %v80 = vmul.f32 %v74, 1.442695
    %v81 = vpow.pop %v80
    %v82 = vmul.f32 %v75, 1.442695
    %v83 = vpow.pop %v82
    %v84 = vsub.f32 1.0, %v77
    %v85 = vsub.f32 1.0, %v79
    %v86 = vsub.f32 1.0, %v81
    %v87 = vsub.f32 1.0, %v83
    %v88 = vmul.f32 %v84, %v84
    %v89 = vmul.f32 %v85, %v85
    %v90 = vmul.f32 %v86, %v86
    %v91 = vmul.f32 %v87, %v87
    %v92 = vmul.f32 %v88, %v68
    %v93 = vmul.f32 %v89, %v69
    %v94 = vmul.f32 %v90, %v70
    %v95 = vmul.f32 %v91, %v71
    %v96 = vlaneseq
    %v97 = vshrl.u32 %v96, 7
    %v98 = vlaneseq
    %v99 = vand.u32 %v98, 127
    %v100 = vadd.s32 %v99, 128
    %v101 = vadd.s32 %v99, 256
    %v102 = vadd.s32 %v99, 384
    %s103 = smul.u32 0, 8
    %v104 = vstv %s103
    %v105 = vadd.s32 %v104, %v97
    %v106 = vmul.u32 %v105, 512
    %v107 = vadd.s32 %v106, %v99
    %v108 = vadd.s32 %v106, %v100
    %v109 = vadd.s32 %v106, %v101
    %v110 = vadd.s32 %v106, %v102
    %vm111 = vcmp.lt.s32.totalorder %v107, 2048
    %vm112 = vcmp.lt.s32.totalorder %v108, 2048
    %vm113 = vcmp.lt.s32.totalorder %v109, 2048
    %vm114 = vcmp.lt.s32.totalorder %v110, 2048
    %v115 = vsel %vm111, %v92, 0.0
    %v116 = vsel %vm112, %v93, 0.0
    %v117 = vsel %vm113, %v94, 0.0
    %v118 = vsel %vm114, %v95, 0.0
    %v119 = vld [vmem:[#allocation2] sm:$0xff]
    %v120 = vld [vmem:[#allocation2 + $0x8] sm:$0xff]
    %v121 = vld [vmem:[#allocation2 + $0x10] sm:$0xff]
    %v122 = vld [vmem:[#allocation2 + $0x18] sm:$0xff]
    %v123 = vadd.f32 %v119, %v115
    %v124 = vadd.f32 %v120, %v116
    %v125 = vadd.f32 %v121, %v117
    %v126 = vadd.f32 %v122, %v118
    %127 = vst [vmem:[#allocation2] sm:$0xff] %v123
    %128 = vst [vmem:[#allocation2 + $0x8] sm:$0xff] %v124
    %129 = vst [vmem:[#allocation2 + $0x10] sm:$0xff] %v125
    %130 = vst [vmem:[#allocation2 + $0x18] sm:$0xff] %v126
    // Predicated region
    $region14: #{_lambda_.1} parent=1 // pred_check
      %p131 = pneg %p12
    $region15: #{_lambda_.1} parent=1 // pred_check_branch
      %133 = sbr.rel (%p131) target = $region17
    $region16: #{_lambda_.1} parent=1 // pred_region
      %v134 = vld [vmem:[#allocation2] sm:$0xff]
      %v135 = vld [vmem:[#allocation2 + $0x8] sm:$0xff]
      %v136 = vld [vmem:[#allocation2 + $0x10] sm:$0xff]
      %v137 = vld [vmem:[#allocation2 + $0x18] sm:$0xff]
      %v138 = vadd.f32 %v134, %v135
      %v139 = vadd.f32 %v138, %v136
      %v140 = vadd.f32 %v139, %v137
      %141 = vadd.xlane.f32.xlu0 %v140
      %v142 = vpop.xlane.xlu0 %141
      %v143 = vrot.slane %v142, 4
      %v144 = vadd.f32 %v142, %v143
      %v145 = vrot.slane %v144, 2
      %v146 = vadd.f32 %v144, %v145
      %v147 = vrot.slane %v146, 1
      %v148 = vadd.f32 %v146, %v147
      %v149 = vmul.f32 %v148, 0.00048828125
      %vm150 = vcmask 0
      %151 = vst.msk [vmem:[#allocation3] sm:$0x1] %vm150, %v149
    $region17: #{_lambda_.1} parent=1 // pred_fallthru
      _
    // Predicated region
    $region18: #{_lambda_.1} parent=1 // pred_check
      _
    $region19: #{_lambda_.1} parent=1 // pred_check_branch
      %153 = sbr.rel (0) target = $region21
    $region20: #{_lambda_.1} parent=1 // pred_region
      %s155 = ssub.s32 16, 16
      %156 = vsyncadd [#allocation4], %s155
      %s158 = sshll.u32 [#allocation3], 4
      %s159 = int_to_ptr.vmem [resolvable:$true] %s158
      %161 = dma.vmem_to_hbm [thread:$0]  %s159, 16, %s2, [#allocation4]
    $region21: #{_lambda_.1} parent=1 // pred_fallthru
      _
    // Predicated region
    $region22: #{_lambda_.1} parent=1 // pred_check
      _
    $region23: #{_lambda_.1} parent=1 // pred_check_branch
      %163 = sbr.rel (0) target = $region25
    $region24: #{_lambda_.1} parent=1 // pred_region
      %164 = dma.done [#allocation4], 16
    $region25: #{_lambda_.1} parent=1 // pred_fallthru
      _
    %165 = vsyncpa [#allocation4], 1

</llo_original>
